<compile_context>
chip_gen: v7x
topology: tpu7x:2x2x1
jax: 0.10.0
libtpu: 0.0.40
codegen_flags: <defaults>
</compile_context>

<pallas_src>
import jax
import jax.numpy as jnp
import numpy as np
from jax.experimental import pallas as pl
from jax.experimental.pallas import tpu as pltpu

H1_PAD = 512   # logical 400, padded for clean MXU/lane tiles
H2_PAD = 384   # logical 300, padded to a multiple of 128
OUT_LANES = 128
TILE_B = 256


def _round_up(n, m):
    return ((n + m - 1) // m) * m


def critic_kernel(x_ref, u_ref, w1x_ref, w1u_ref, b1_ref, w2_ref, b2_ref,
                  w3_ref, b3_ref, o_ref):
    # Cast activations to bf16 once per tile; accumulate in f32 on the MXU.
    xb = x_ref[...].astype(jnp.bfloat16)                     # (tb, state_dim)
    ub = u_ref[...].astype(jnp.bfloat16)                     # (tb, action_dim)

    # Layer 1: split-K matmul replaces cat([x, u]) @ w1.
    h1 = jnp.dot(xb, w1x_ref[...], preferred_element_type=jnp.float32)
    h1 = h1 + jnp.dot(ub, w1u_ref[...], preferred_element_type=jnp.float32)
    h1 = jnp.maximum(h1 + b1_ref[...], 0.0)                  # (tb, H1) f32

    # Layer 2.
    h2 = jnp.dot(h1.astype(jnp.bfloat16), w2_ref[...],
                 preferred_element_type=jnp.float32)
    h2 = jnp.maximum(h2 + b2_ref[...], 0.0)                  # (tb, H2) f32

    # Layer 3 (out_features == 1): elementwise mul + lane reduction on VPU/XLU
    # instead of pushing a 1-column matmul through the MXU.
    w3 = w3_ref[...].astype(jnp.float32)                     # (1, H2)
    q = jnp.sum(h2 * w3, axis=-1, keepdims=True)             # (tb, 1)
    q = q + b3_ref[...]                                      # (1, 1) broadcasts

    # Lane-dense output slab: broadcast q across 128 lanes (wrapper keeps col 0).
    o_ref[...] = jnp.broadcast_to(q, o_ref.shape).astype(o_ref.dtype)


def critic_forward(x, u, params, tile_b=TILE_B):
    """x: (B, state_dim), u: (B, action_dim). Returns (B, 1) float32."""
    w1x, w1u, b1, w2, b2, w3, b3 = params
    B, state_dim = x.shape
    action_dim = u.shape[1]
    H1 = w1x.shape[1]
    H2 = w2.shape[1]

    # Pick batch tile: 256 rows for large batches, otherwise one 8-aligned tile.
    tb = tile_b if B >= tile_b else _round_up(max(B, 1), 8)
    Bp = _round_up(B, tb)
    if Bp != B:
        x = jnp.pad(x, ((0, Bp - B), (0, 0)))
        u = jnp.pad(u, ((0, Bp - B), (0, 0)))
    grid = (Bp // tb,)

    # Advisory cost estimate so XLA can overlap this small call with neighbors.
    flops = 2 * Bp * ((state_dim + action_dim) * H1 + H1 * H2 + H2)
    bytes_accessed = (
        ((state_dim + action_dim) * H1 + H1 * H2 + H2) * 2     # bf16 weights
        + (H1 + H2 + 1) * 4                                    # f32 biases
        + Bp * (state_dim + action_dim) * 4                    # inputs
        + Bp * OUT_LANES * 4                                   # output slab
    )

    resident = lambda r, c: pl.BlockSpec((r, c), lambda i: (0, 0))

    out = pl.pallas_call(
        critic_kernel,
        out_shape=jax.ShapeDtypeStruct((Bp, OUT_LANES), jnp.float32),
        grid=grid,
        in_specs=[
            pl.BlockSpec((tb, state_dim), lambda i: (i, 0)),    # x
            pl.BlockSpec((tb, action_dim), lambda i: (i, 0)),   # u
            resident(state_dim, H1),                            # w1x
            resident(action_dim, H1),                           # w1u
            resident(1, H1),                                    # b1
            resident(H1, H2),                                   # w2
            resident(1, H2),                                    # b2
            resident(1, H2),                                    # w3 (row vector)
            resident(1, 1),                                     # b3
        ],
        out_specs=pl.BlockSpec((tb, OUT_LANES), lambda i: (i, 0)),
        compiler_params=pltpu.CompilerParams(
            dimension_semantics=("parallel",)),
        cost_estimate=pl.CostEstimate(
            flops=flops, transcendentals=0, bytes_accessed=bytes_accessed),
    )(x, u, w1x, w1u, b1, w2, b2, w3, b3)

    return out[:B, :1]


def init_params(key, state_dim, action_dim, h1=H1_PAD, h2=H2_PAD):
    """PyTorch nn.Linear default init (U[-1/sqrt(fan_in), 1/sqrt(fan_in)]) on the
    logical shapes, then zero-padded / split / bf16-cast for the kernel."""
    def linear(k, fan_in, fan_out):
        kw, kb = jax.random.split(k)
        bound = 1.0 / np.sqrt(fan_in)
        w = jax.random.uniform(kw, (fan_in, fan_out), jnp.float32, -bound, bound)
        b = jax.random.uniform(kb, (1, fan_out), jnp.float32, -bound, bound)
        return w, b

    k1, k2, k3 = jax.random.split(key, 3)
    w1, b1 = linear(k1, state_dim + action_dim, 400)   # stored [in, out]
    w2, b2 = linear(k2, 400, 300)
    w3, b3 = linear(k3, 300, 1)

    # Zero-pad hidden dims (400 -> h1, 300 -> h2); padding is mathematically inert.
    w1p = jnp.zeros((state_dim + action_dim, h1), jnp.float32).at[:, :400].set(w1)
    b1p = jnp.zeros((1, h1), jnp.float32).at[:, :400].set(b1)
    w2p = jnp.zeros((h1, h2), jnp.float32).at[:400, :300].set(w2)
    b2p = jnp.zeros((1, h2), jnp.float32).at[:, :300].set(b2)
    w3p = jnp.zeros((1, h2), jnp.float32).at[0, :300].set(w3[:, 0])

    return (
        w1p[:state_dim].astype(jnp.bfloat16),   # w1x: (state_dim, h1)
        w1p[state_dim:].astype(jnp.bfloat16),   # w1u: (action_dim, h1)
        b1p,                                    # (1, h1) f32
        w2p.astype(jnp.bfloat16),               # (h1, h2)
        b2p,                                    # (1, h2) f32
        w3p.astype(jnp.bfloat16),               # (1, h2) row vector
        b3,                                     # (1, 1) f32
    )


def critic_reference(x, u, params):
    """Pure-JAX reference using the same (bf16, padded) parameters."""
    w1x, w1u, b1, w2, b2, w3, b3 = params
    h1 = (jnp.dot(x.astype(jnp.bfloat16), w1x, preferred_element_type=jnp.float32)
          + jnp.dot(u.astype(jnp.bfloat16), w1u, preferred_element_type=jnp.float32)
          + b1)
    h1 = jax.nn.relu(h1)
    h2 = jax.nn.relu(
        jnp.dot(h1.astype(jnp.bfloat16), w2, preferred_element_type=jnp.float32) + b2)
    return jnp.sum(h2 * w3.astype(jnp.float32), axis=-1, keepdims=True) + b3


if __name__ == "__main__":
    state_dim, action_dim = 8, 4
    key = jax.random.PRNGKey(0)
    kp, kx, ku = jax.random.split(key, 3)
    params = init_params(kp, state_dim, action_dim)

    # Small batch (single tile, sublane-padded internally).
    batch = 2
    x = jax.random.normal(kx, (batch, state_dim), jnp.float32)
    u = jax.random.normal(ku, (batch, action_dim), jnp.float32)
    out = jax.block_until_ready(critic_forward(x, u, params))
    ref = jax.block_until_ready(critic_reference(x, u, params))
    assert out.shape == (batch, 1), out.shape
    np.testing.assert_allclose(np.asarray(out), np.asarray(ref), rtol=1e-2, atol=1e-2)

    # Larger, non-multiple-of-tile batch: exercises the grid + padding path.
    batch2 = 300
    x2 = jax.random.normal(kx, (batch2, state_dim), jnp.float32)
    u2 = jax.random.normal(ku, (batch2, action_dim), jnp.float32)
    out2 = jax.block_until_ready(critic_forward(x2, u2, params))
    ref2 = jax.block_until_ready(critic_reference(x2, u2, params))
    assert out2.shape == (batch2, 1), out2.shape
    np.testing.assert_allclose(np.asarray(out2), np.asarray(ref2), rtol=1e-2, atol=1e-2)

    print("KERNEL_OK")
</pallas_src>

<mosaic_0001>
module attributes {stable_mosaic.version = 11 : i64} {
  func.func @critic_kernel(%arg0: i32, %arg1: memref<8x8xf32, #tpu.memory_space<vmem>>, %arg2: memref<8x4xf32, #tpu.memory_space<vmem>>, %arg3: memref<8x512xbf16, #tpu.memory_space<vmem>>, %arg4: memref<4x512xbf16, #tpu.memory_space<vmem>>, %arg5: memref<1x512xf32, #tpu.memory_space<vmem>>, %arg6: memref<512x384xbf16, #tpu.memory_space<vmem>>, %arg7: memref<1x384xf32, #tpu.memory_space<vmem>>, %arg8: memref<1x384xbf16, #tpu.memory_space<vmem>>, %arg9: memref<1x1xf32, #tpu.memory_space<vmem>>, %arg10: memref<8x128xf32, #tpu.memory_space<vmem>>) attributes {dimension_semantics = [#tpu.dimension_semantics<parallel>], iteration_bounds = array<i64: 1>, scalar_prefetch = 0 : i64, scratch_operands = 0 : i64, tpu.core_type = #tpu.core_type<tc>, window_params = [{transform_indices = @transform_0, window_bounds = array<i64: 8, 8>}, {transform_indices = @transform_1, window_bounds = array<i64: 8, 4>}, {pipeline_mode = #tpu.pipeline_mode<synchronous>, transform_indices = @transform_2, window_bounds = array<i64: 8, 512>}, {pipeline_mode = #tpu.pipeline_mode<synchronous>, transform_indices = @transform_3, window_bounds = array<i64: 4, 512>}, {pipeline_mode = #tpu.pipeline_mode<synchronous>, transform_indices = @transform_4, window_bounds = array<i64: 1, 512>}, {pipeline_mode = #tpu.pipeline_mode<synchronous>, transform_indices = @transform_5, window_bounds = array<i64: 512, 384>}, {pipeline_mode = #tpu.pipeline_mode<synchronous>, transform_indices = @transform_6, window_bounds = array<i64: 1, 384>}, {pipeline_mode = #tpu.pipeline_mode<synchronous>, transform_indices = @transform_7, window_bounds = array<i64: 1, 384>}, {pipeline_mode = #tpu.pipeline_mode<synchronous>, transform_indices = @transform_8, window_bounds = array<i64: 1, 1>}, {transform_indices = @transform_9, window_bounds = array<i64: 8, 128>}]} {
    %c0 = arith.constant 0 : index
    %c0_0 = arith.constant 0 : index
    %0 = vector.load %arg1[%c0, %c0_0] : memref<8x8xf32, #tpu.memory_space<vmem>>, vector<8x8xf32>
    %1 = arith.truncf %0 : vector<8x8xf32> to vector<8x8xbf16>
    %c0_1 = arith.constant 0 : index
    %c0_2 = arith.constant 0 : index
    %2 = vector.load %arg2[%c0_1, %c0_2] : memref<8x4xf32, #tpu.memory_space<vmem>>, vector<8x4xf32>
    %3 = arith.truncf %2 : vector<8x4xf32> to vector<8x4xbf16>
    %c0_3 = arith.constant 0 : index
    %c0_4 = arith.constant 0 : index
    %4 = vector.load %arg3[%c0_3, %c0_4] : memref<8x512xbf16, #tpu.memory_space<vmem>>, vector<8x512xbf16>
    %cst = arith.constant dense<0.000000e+00> : vector<8x512xf32>
    %5 = tpu.matmul %1, %4, %cst {dimension_numbers = #tpu.dot_dimension_numbers<[1], [0], [0], [1], [0, 0, 1, 1], [], []>} : vector<8x8xbf16>, vector<8x512xbf16>, vector<8x512xf32> -> vector<8x512xf32>
    %c0_5 = arith.constant 0 : index
    %c0_6 = arith.constant 0 : index
    %6 = vector.load %arg4[%c0_5, %c0_6] : memref<4x512xbf16, #tpu.memory_space<vmem>>, vector<4x512xbf16>
    %cst_7 = arith.constant dense<0.000000e+00> : vector<8x512xf32>
    %7 = tpu.matmul %3, %6, %cst_7 {dimension_numbers = #tpu.dot_dimension_numbers<[1], [0], [0], [1], [0, 0, 1, 1], [], []>} : vector<8x4xbf16>, vector<4x512xbf16>, vector<8x512xf32> -> vector<8x512xf32>
    %8 = arith.addf %5, %7 : vector<8x512xf32>
    %c0_8 = arith.constant 0 : index
    %c0_9 = arith.constant 0 : index
    %9 = vector.load %arg5[%c0_8, %c0_9] : memref<1x512xf32, #tpu.memory_space<vmem>>, vector<1x512xf32>
    %10 = vector.broadcast %9 : vector<1x512xf32> to vector<8x512xf32>
    %11 = arith.addf %8, %10 : vector<8x512xf32>
    %cst_10 = arith.constant 0.000000e+00 : f32
    %12 = vector.broadcast %cst_10 : f32 to vector<8x512xf32>
    %13 = arith.maximumf %11, %12 : vector<8x512xf32>
    %14 = arith.truncf %13 : vector<8x512xf32> to vector<8x512xbf16>
    %c0_11 = arith.constant 0 : index
    %c0_12 = arith.constant 0 : index
    %15 = vector.load %arg6[%c0_11, %c0_12] : memref<512x384xbf16, #tpu.memory_space<vmem>>, vector<512x384xbf16>
    %cst_13 = arith.constant dense<0.000000e+00> : vector<8x384xf32>
    %16 = tpu.matmul %14, %15, %cst_13 {dimension_numbers = #tpu.dot_dimension_numbers<[1], [0], [0], [1], [0, 0, 1, 1], [], []>} : vector<8x512xbf16>, vector<512x384xbf16>, vector<8x384xf32> -> vector<8x384xf32>
    %c0_14 = arith.constant 0 : index
    %c0_15 = arith.constant 0 : index
    %17 = vector.load %arg7[%c0_14, %c0_15] : memref<1x384xf32, #tpu.memory_space<vmem>>, vector<1x384xf32>
    %18 = vector.broadcast %17 : vector<1x384xf32> to vector<8x384xf32>
    %19 = arith.addf %16, %18 : vector<8x384xf32>
    %cst_16 = arith.constant 0.000000e+00 : f32
    %20 = vector.broadcast %cst_16 : f32 to vector<8x384xf32>
    %21 = arith.maximumf %19, %20 : vector<8x384xf32>
    %c0_17 = arith.constant 0 : index
    %c0_18 = arith.constant 0 : index
    %22 = vector.load %arg8[%c0_17, %c0_18] : memref<1x384xbf16, #tpu.memory_space<vmem>>, vector<1x384xbf16>
    %23 = arith.extf %22 : vector<1x384xbf16> to vector<1x384xf32>
    %24 = vector.broadcast %23 : vector<1x384xf32> to vector<8x384xf32>
    %25 = arith.mulf %21, %24 : vector<8x384xf32>
    %cst_19 = arith.constant dense<0.000000e+00> : vector<8xf32>
    %26 = vector.multi_reduction <add>, %25, %cst_19 [1] : vector<8x384xf32> to vector<8xf32>
    %27 = vector.shape_cast %26 : vector<8xf32> to vector<8x1xf32>
    %c0_20 = arith.constant 0 : index
    %c0_21 = arith.constant 0 : index
    %28 = vector.load %arg9[%c0_20, %c0_21] : memref<1x1xf32, #tpu.memory_space<vmem>>, vector<1x1xf32>
    %29 = vector.broadcast %28 : vector<1x1xf32> to vector<8x1xf32>
    %30 = arith.addf %27, %29 : vector<8x1xf32>
    %31 = vector.shape_cast %30 : vector<8x1xf32> to vector<8x1xf32>
    %32 = vector.broadcast %31 : vector<8x1xf32> to vector<8x128xf32>
    %c0_22 = arith.constant 0 : index
    %c0_23 = arith.constant 0 : index
    %33 = vector.load %arg10[%c0_22, %c0_23] : memref<8x128xf32, #tpu.memory_space<vmem>>, vector<8x128xf32>
    tpu.vector_store %arg10[%c0_22, %c0_23], %32 {strides = array<i32>} : memref<8x128xf32, #tpu.memory_space<vmem>>, vector<8x128xf32>,
    return
  }
  func.func @transform_0(%arg0: i32) -> (i32, i32) {
    %c0_i32 = arith.constant 0 : i32
    %c0_i32_0 = arith.constant 0 : i32
    return %arg0, %c0_i32 : i32, i32
  }
  func.func @transform_1(%arg0: i32) -> (i32, i32) {
    %c0_i32 = arith.constant 0 : i32
    %c0_i32_0 = arith.constant 0 : i32
    return %arg0, %c0_i32 : i32, i32
  }
  func.func @transform_2(%arg0: i32) -> (i32, i32) {
    %c0_i32 = arith.constant 0 : i32
    %c0_i32_0 = arith.constant 0 : i32
    %c0_i32_1 = arith.constant 0 : i32
    return %c0_i32, %c0_i32_0 : i32, i32
  }
  func.func @transform_3(%arg0: i32) -> (i32, i32) {
    %c0_i32 = arith.constant 0 : i32
    %c0_i32_0 = arith.constant 0 : i32
    %c0_i32_1 = arith.constant 0 : i32
    return %c0_i32, %c0_i32_0 : i32, i32
  }
  func.func @transform_4(%arg0: i32) -> (i32, i32) {
    %c0_i32 = arith.constant 0 : i32
    %c0_i32_0 = arith.constant 0 : i32
    %c0_i32_1 = arith.constant 0 : i32
    return %c0_i32, %c0_i32_0 : i32, i32
  }
  func.func @transform_5(%arg0: i32) -> (i32, i32) {
    %c0_i32 = arith.constant 0 : i32
    %c0_i32_0 = arith.constant 0 : i32
    %c0_i32_1 = arith.constant 0 : i32
    return %c0_i32, %c0_i32_0 : i32, i32
  }
  func.func @transform_6(%arg0: i32) -> (i32, i32) {
    %c0_i32 = arith.constant 0 : i32
    %c0_i32_0 = arith.constant 0 : i32
    %c0_i32_1 = arith.constant 0 : i32
    return %c0_i32, %c0_i32_0 : i32, i32
  }
  func.func @transform_7(%arg0: i32) -> (i32, i32) {
    %c0_i32 = arith.constant 0 : i32
    %c0_i32_0 = arith.constant 0 : i32
    %c0_i32_1 = arith.constant 0 : i32
    return %c0_i32, %c0_i32_0 : i32, i32
  }
  func.func @transform_8(%arg0: i32) -> (i32, i32) {
    %c0_i32 = arith.constant 0 : i32
    %c0_i32_0 = arith.constant 0 : i32
    %c0_i32_1 = arith.constant 0 : i32
    return %c0_i32, %c0_i32_0 : i32, i32
  }
  func.func @transform_9(%arg0: i32) -> (i32, i32) {
    %c0_i32 = arith.constant 0 : i32
    %c0_i32_0 = arith.constant 0 : i32
    return %arg0, %c0_i32 : i32, i32
  }
}

</mosaic_0001>

<llo_original>
// kernel: tpu_custom_call.1
$region0: #{tpu_custom_call.1}
  #allocation0 [shape = 'u32[]', space=smem, size = 0x4, offset = 0x4, fixed_abs, tag = 'smem constant byte address 0x4 - core index']
  #allocation1 [shape = 'u32[144,128]{1,0:T(1,128)}', space=vmem, size = 0x12000, scoped, tag = 'internal scratch']
  #allocation2 [shape = 'f32[1,1]{1,0:T(1,128)S(1)}', space=vmem, size = 0x200, scoped, tag = 'scoped memory for tpu_custom_call.1']
  %s0 = inlined_call_operand.hbm [shape: f32[8,8], index: 0, kind: input, shape index: {}]
  %s1 = inlined_call_operand.vmem [shape: f32[8,4], index: 1, kind: input, shape index: {}]
  %s2 = inlined_call_operand.vmem [shape: bf16[8,512], index: 2, kind: input, shape index: {}]
  %s3 = inlined_call_operand.vmem [shape: bf16[4,512], index: 3, kind: input, shape index: {}]
  %s4 = inlined_call_operand.vmem [shape: f32[1,512], index: 4, kind: input, shape index: {}]
  %s5 = inlined_call_operand.hbm [shape: bf16[512,384], index: 5, kind: input, shape index: {}]
  %s6 = inlined_call_operand.vmem [shape: f32[1,384], index: 6, kind: input, shape index: {}]
  %s7 = inlined_call_operand.vmem [shape: bf16[1,384], index: 7, kind: input, shape index: {}]
  %s8 = inlined_call_operand.<no memory space> [shape: f32[1,1], index: 8, kind: input, shape index: {}]
  %s9 = inlined_call_operand.hbm [shape: f32[8,128], index: 9, kind: output, shape index: {}]
  %s10 = sld [smem:[#allocation0]]
  $region54: #{tpu_custom_call.1} parent=0
    _
  %s12 = ssub.s32 1, %s10
  %s13 = scalar_select 0, %s12, %s10
  %v14 = vstv %s8
  %15 = vst [vmem:[#allocation2] sm:$0x1] %v14
  $region1: #{tpu_custom_call.1} parent=0
    #allocation3 [shape = 'u8[4096]{0}', space=vmem, size = 0x1000, scoped, tag = 'input window, operand 0, single buffered']
    #allocation4 [shape = 's32[1]{0}', space=sflag, size = 0x4, scoped, tag = 'scoped memory for tpu_custom_call.1']
    #allocation5 [shape = 's32[1]{0}', space=sflag, size = 0x4, scoped, tag = 'scoped memory for tpu_custom_call.1']
    #allocation6 [shape = 'u8[393216]{0}', space=vmem, size = 0x60000, scoped, tag = 'input window, operand 5, single buffered']
    #allocation7 [shape = 's32[1]{0}', space=sflag, size = 0x4, scoped, tag = 'scoped memory for tpu_custom_call.1']
    #allocation8 [shape = 'u8[4096]{0}', space=vmem, size = 0x1000, scoped, tag = 'output window, operand 0, single buffered']
    %16 = vsyncpa [#allocation4], 0
    %17 = vsyncpa [#allocation7], 0
    %18 = vsyncpa [#allocation5], 0
    // Predicated region
    $region2: #{tpu_custom_call.1} parent=1 // pred_check
      _
    $region3: #{tpu_custom_call.1} parent=1 // pred_check_branch
      %20 = sbr.rel (0) target = $region5
    $region4: #{tpu_custom_call.1} parent=1 // pred_region
      %s22 = ssub.s32 128, 128
      %23 = vsyncadd [#allocation4], %s22
      %s25 = sshll.u32 [#allocation3], 4
      %s26 = int_to_ptr.vmem [resolvable:$true] %s25
      %28 = dma.hbm_to_vmem [thread:$0]  %s0, 128, %s26, [#allocation4]
    $region5: #{tpu_custom_call.1} parent=1 // pred_fallthru
      _
    // Predicated region
    $region6: #{tpu_custom_call.1} parent=1 // pred_check
      _
    $region7: #{tpu_custom_call.1} parent=1 // pred_check_branch
      %30 = sbr.rel (0) target = $region9
    $region8: #{tpu_custom_call.1} parent=1 // pred_region
      _
    $region9: #{tpu_custom_call.1} parent=1 // pred_fallthru
      _
    // Predicated region
    $region10: #{tpu_custom_call.1} parent=1 // pred_check
      _
    $region11: #{tpu_custom_call.1} parent=1 // pred_check_branch
      %32 = sbr.rel (0) target = $region13
    $region12: #{tpu_custom_call.1} parent=1 // pred_region
      _
    $region13: #{tpu_custom_call.1} parent=1 // pred_fallthru
      _
    // Predicated region
    $region14: #{tpu_custom_call.1} parent=1 // pred_check
      _
    $region15: #{tpu_custom_call.1} parent=1 // pred_check_branch
      %34 = sbr.rel (0) target = $region17
    $region16: #{tpu_custom_call.1} parent=1 // pred_region
      _
    $region17: #{tpu_custom_call.1} parent=1 // pred_fallthru
      _
    // Predicated region
    $region18: #{tpu_custom_call.1} parent=1 // pred_check
      _
    $region19: #{tpu_custom_call.1} parent=1 // pred_check_branch
      %36 = sbr.rel (0) target = $region21
    $region20: #{tpu_custom_call.1} parent=1 // pred_region
      _
    $region21: #{tpu_custom_call.1} parent=1 // pred_fallthru
      _
    // Predicated region
    $region22: #{tpu_custom_call.1} parent=1 // pred_check
      _
    $region23: #{tpu_custom_call.1} parent=1 // pred_check_branch
      %38 = sbr.rel (0) target = $region25
    $region24: #{tpu_custom_call.1} parent=1 // pred_region
      %s40 = ssub.s32 12288, 12288
      %41 = vsyncadd [#allocation7], %s40
      %s42 = sshll.u32 [#allocation6], 4
      %s43 = int_to_ptr.vmem [resolvable:$true] %s42
      %48 = dma.hbm_to_vmem [thread:$0]  %s5, 12288, %s43, [#allocation7], 192, 192, 12
    $region25: #{tpu_custom_call.1} parent=1 // pred_fallthru
      _
    // Predicated region
    $region26: #{tpu_custom_call.1} parent=1 // pred_check
      _
    $region27: #{tpu_custom_call.1} parent=1 // pred_check_branch
      %50 = sbr.rel (0) target = $region29
    $region28: #{tpu_custom_call.1} parent=1 // pred_region
      _
    $region29: #{tpu_custom_call.1} parent=1 // pred_fallthru
      _
    // Predicated region
    $region30: #{tpu_custom_call.1} parent=1 // pred_check
      _
    $region31: #{tpu_custom_call.1} parent=1 // pred_check_branch
      %52 = sbr.rel (0) target = $region33
    $region32: #{tpu_custom_call.1} parent=1 // pred_region
      _
    $region33: #{tpu_custom_call.1} parent=1 // pred_fallthru
      _
    // Predicated region
    $region34: #{tpu_custom_call.1} parent=1 // pred_check
      _
    $region35: #{tpu_custom_call.1} parent=1 // pred_check_branch
      %54 = sbr.rel (0) target = $region37
    $region36: #{tpu_custom_call.1} parent=1 // pred_region
      _
    $region37: #{tpu_custom_call.1} parent=1 // pred_fallthru
      _
    // Predicated region
    $region38: #{tpu_custom_call.1} parent=1 // pred_check
      _
    $region39: #{tpu_custom_call.1} parent=1 // pred_check_branch
      %56 = sbr.rel (0) target = $region41
    $region40: #{tpu_custom_call.1} parent=1 // pred_region
      %57 = dma.done [#allocation4], 128
    $region41: #{tpu_custom_call.1} parent=1 // pred_fallthru
      _
    // Predicated region
    $region42: #{tpu_custom_call.1} parent=1 // pred_check
      _
    $region43: #{tpu_custom_call.1} parent=1 // pred_check_branch
      %59 = sbr.rel (0) target = $region45
    $region44: #{tpu_custom_call.1} parent=1 // pred_region
      %60 = dma.done [#allocation7], 12288
    $region45: #{tpu_custom_call.1} parent=1 // pred_fallthru
      _
    %v62 = vld [vmem:[#allocation3] sm:$0xff]
    %v63 = vpack.c.bf16 %v62, %v62
    %v64 = vld [vmem:[%s1] sm:$0xff]
    %v65 = vpack.c.bf16 %v64, %v64
    %v66 = vld [vmem:[%s2] sm:$0xff]
    %v67 = vld [vmem:[%s2 + $0x8] sm:$0xff]
    %v68 = vld [vmem:[%s3] sm:$0xff]
    %v70 = vcombine.high %v68, %v68
    %v72 = vunpack.c.l.s4 1983009808
    %v73 = vunpack.c.0.s8 %v72
    %v74 = vlaneseq
    %v75 = vshrl.u32 %v74, 7
    %v76 = vsub.s32 %v73, %v75
    %v77 = vrot.slane %v68, %v76
    %v79 = vunpack.c.l.s4 1983009808
    %v80 = vunpack.c.0.s8 %v79
    %v81 = vlaneseq
    %v82 = vshrl.u32 %v81, 7
    %v83 = vsub.s32 %v80, %v82
    %v84 = vrot.slane %v70, %v83
    %v85 = vcombine.high %v77, %v77
    %v86 = vcombine.high %v84, %v84
    %vm87 = vcmask 31744
    %v89 = vsel %vm87, %v65, 0
    %vm91 = vcmask 1041408
    %v93 = vsel %vm91, %v77, 0
    %v96 = vsel %vm91, %v85, 0
    %v99 = vsel %vm91, %v84, 0
    %v102 = vsel %vm91, %v86, 0
    %104 = vmatprep.subr.bf16.mxu0 %v96
    %105 = vmatpush1.bf16.msra.mxu0 %v93
    %106 = vmatprep.subr.bf16.mxu0 0
    %107 = vmatpush1.bf16.msra.mxu0 0
    %108 = vmatprep.subr.bf16.mxu0 0
    %109 = vmatpush1.bf16.msra.mxu0 0
    %110 = vmatprep.subr.bf16.mxu0 0
    %111 = vmatpush1.bf16.msra.mxu0 0
    %112 = vmatprep.subr.bf16.mxu0 0
    %113 = vmatpush1.bf16.msra.mxu0 0
    %114 = vmatprep.subr.bf16.mxu0 0
    %115 = vmatpush1.bf16.msra.mxu0 0
    %116 = vmatprep.subr.bf16.mxu0 0
    %117 = vmatpush1.bf16.msra.mxu0 0
    %118 = vmatprep.subr.bf16.mxu0 0
    %119 = vmatpush1.bf16.msra.mxu0 0
    %120 = vmatprep.subr.bf16.mxu0 0
    %121 = vmatpush1.bf16.msra.mxu0 0
    %122 = vmatprep.subr.bf16.mxu0 0
    %123 = vmatpush1.bf16.msra.mxu0 0
    %124 = vmatprep.subr.bf16.mxu0 0
    %125 = vmatpush1.bf16.msra.mxu0 0
    %126 = vmatprep.subr.bf16.mxu0 0
    %127 = vmatpush1.bf16.msra.mxu0 0
    %128 = vmatprep.subr.bf16.mxu0 0
    %129 = vmatpush1.bf16.msra.mxu0 0
    %130 = vmatprep.subr.bf16.mxu0 0
    %131 = vmatpush1.bf16.msra.mxu0 0
    %132 = vmatprep.subr.bf16.mxu0 0
    %133 = vmatpush1.bf16.msra.mxu0 0
    %134 = vmatprep.subr.bf16.mxu0 0
    %135 = vmatpush1.bf16.msra.mxu0 0
    %136 = vmatprep.mubr.bf16.mxu0 0
    %137 = vmatmul.mubr.bf16.gmra.mrb[0].mxu0 %v89
    %v138 = vpop.f32.mrb[0].mxu0
    %v139 = vadd.f32 0.0, %v138
    %v140 = vpop.f32.mrb[0].mxu0
    %v141 = vadd.f32 0.0, %v140
    %v142 = vpop.f32.mrb[0].mxu0
    %v143 = vpop.f32.mrb[0].mxu0
    %144 = vdwg.mxu0
    %145 = vmatprep.subr.bf16.mxu0 %v102
    %146 = vmatpush1.bf16.msra.mxu0 %v99
    %147 = vmatprep.subr.bf16.mxu0 0
    %148 = vmatpush1.bf16.msra.mxu0 0
    %149 = vmatprep.subr.bf16.mxu0 0
    %150 = vmatpush1.bf16.msra.mxu0 0
    %151 = vmatprep.subr.bf16.mxu0 0
    %152 = vmatpush1.bf16.msra.mxu0 0
    %153 = vmatprep.subr.bf16.mxu0 0
    %154 = vmatpush1.bf16.msra.mxu0 0
    %155 = vmatprep.subr.bf16.mxu0 0
    %156 = vmatpush1.bf16.msra.mxu0 0
    %157 = vmatprep.subr.bf16.mxu0 0
    %158 = vmatpush1.bf16.msra.mxu0 0
    %159 = vmatprep.subr.bf16.mxu0 0
    %160 = vmatpush1.bf16.msra.mxu0 0
    %161 = vmatprep.subr.bf16.mxu0 0
    %162 = vmatpush1.bf16.msra.mxu0 0
    %163 = vmatprep.subr.bf16.mxu0 0
    %164 = vmatpush1.bf16.msra.mxu0 0
    %165 = vmatprep.subr.bf16.mxu0 0
    %166 = vmatpush1.bf16.msra.mxu0 0
    %167 = vmatprep.subr.bf16.mxu0 0
    %168 = vmatpush1.bf16.msra.mxu0 0
    %169 = vmatprep.subr.bf16.mxu0 0
    %170 = vmatpush1.bf16.msra.mxu0 0
    %171 = vmatprep.subr.bf16.mxu0 0
    %172 = vmatpush1.bf16.msra.mxu0 0
    %173 = vmatprep.subr.bf16.mxu0 0
    %174 = vmatpush1.bf16.msra.mxu0 0
    %175 = vmatprep.subr.bf16.mxu0 0
    %176 = vmatpush1.bf16.msra.mxu0 0
    %177 = vmatprep.mubr.bf16.mxu0 0
    %178 = vmatmul.mubr.bf16.gmra.mrb[0].mxu0 %v89
    %v179 = vpop.f32.mrb[0].mxu0
    %v180 = vadd.f32 0.0, %v179
    %v181 = vpop.f32.mrb[0].mxu0
    %v182 = vadd.f32 0.0, %v181
    %v183 = vpop.f32.mrb[0].mxu0
    %v184 = vpop.f32.mrb[0].mxu0
    %185 = vdwg.mxu0
    %v188 = vunpack.c.l.b16 %v66
    %v189 = vunpack.c.h.b16 %v66
    %v190 = vunpack.c.l.b16 %v67
    %v191 = vunpack.c.h.b16 %v67
    %v192 = vpack.c.b16 %v188, %v188
    %v193 = vpack.c.b16 %v189, %v189
    %v194 = vpack.c.b16 %v190, %v190
    %v195 = vpack.c.b16 %v191, %v191
    %vm196 = vcmask 64512
    %v198 = vsel %vm196, %v63, 0
    %vm200 = vcmask 1043456
    %v202 = vsel %vm200, %v192, 0
    %v205 = vsel %vm200, %v193, 0
    %v208 = vsel %vm200, %v194, 0
    %v211 = vsel %vm200, %v195, 0
    %213 = vmatprep.subr.bf16.mxu0 %v205
    %214 = vmatpush1.bf16.msra.mxu0 %v202
    %215 = vmatprep.subr.bf16.mxu0 0
    %216 = vmatpush1.bf16.msra.mxu0 0
    %217 = vmatprep.subr.bf16.mxu0 0
    %218 = vmatpush1.bf16.msra.mxu0 0
    %219 = vmatprep.subr.bf16.mxu0 0
    %220 = vmatpush1.bf16.msra.mxu0 0
    %221 = vmatprep.subr.bf16.mxu0 0
    %222 = vmatpush1.bf16.msra.mxu0 0
    %223 = vmatprep.subr.bf16.mxu0 0
    %224 = vmatpush1.bf16.msra.mxu0 0
    %225 = vmatprep.subr.bf16.mxu0 0
    %226 = vmatpush1.bf16.msra.mxu0 0
    %227 = vmatprep.subr.bf16.mxu0 0
    %228 = vmatpush1.bf16.msra.mxu0 0
    %229 = vmatprep.subr.bf16.mxu0 0
    %230 = vmatpush1.bf16.msra.mxu0 0
    %231 = vmatprep.subr.bf16.mxu0 0
    %232 = vmatpush1.bf16.msra.mxu0 0
    %233 = vmatprep.subr.bf16.mxu0 0
    %234 = vmatpush1.bf16.msra.mxu0 0
    %235 = vmatprep.subr.bf16.mxu0 0
    %236 = vmatpush1.bf16.msra.mxu0 0
    %237 = vmatprep.subr.bf16.mxu0 0
    %238 = vmatpush1.bf16.msra.mxu0 0
    %239 = vmatprep.subr.bf16.mxu0 0
    %240 = vmatpush1.bf16.msra.mxu0 0
    %241 = vmatprep.subr.bf16.mxu0 0
    %242 = vmatpush1.bf16.msra.mxu0 0
    %243 = vmatprep.subr.bf16.mxu0 0
    %244 = vmatpush1.bf16.msra.mxu0 0
    %245 = vmatprep.mubr.bf16.mxu0 0
    %246 = vmatmul.mubr.bf16.gmra.mrb[0].mxu0 %v198
    %v247 = vpop.f32.mrb[0].mxu0
    %v248 = vadd.f32 %v139, %v247
    %v249 = vpop.f32.mrb[0].mxu0
    %v250 = vadd.f32 %v141, %v249
    %v251 = vpop.f32.mrb[0].mxu0
    %v252 = vpop.f32.mrb[0].mxu0
    %253 = vdwg.mxu0
    %254 = vmatprep.subr.bf16.mxu0 %v211
    %255 = vmatpush1.bf16.msra.mxu0 %v208
    %256 = vmatprep.subr.bf16.mxu0 0
    %257 = vmatpush1.bf16.msra.mxu0 0
    %258 = vmatprep.subr.bf16.mxu0 0
    %259 = vmatpush1.bf16.msra.mxu0 0
    %260 = vmatprep.subr.bf16.mxu0 0
    %261 = vmatpush1.bf16.msra.mxu0 0
    %262 = vmatprep.subr.bf16.mxu0 0
    %263 = vmatpush1.bf16.msra.mxu0 0
    %264 = vmatprep.subr.bf16.mxu0 0
    %265 = vmatpush1.bf16.msra.mxu0 0
    %266 = vmatprep.subr.bf16.mxu0 0
    %267 = vmatpush1.bf16.msra.mxu0 0
    %268 = vmatprep.subr.bf16.mxu0 0
    %269 = vmatpush1.bf16.msra.mxu0 0
    %270 = vmatprep.subr.bf16.mxu0 0
    %271 = vmatpush1.bf16.msra.mxu0 0
    %272 = vmatprep.subr.bf16.mxu0 0
    %273 = vmatpush1.bf16.msra.mxu0 0
    %274 = vmatprep.subr.bf16.mxu0 0
    %275 = vmatpush1.bf16.msra.mxu0 0
    %276 = vmatprep.subr.bf16.mxu0 0
    %277 = vmatpush1.bf16.msra.mxu0 0
    %278 = vmatprep.subr.bf16.mxu0 0
    %279 = vmatpush1.bf16.msra.mxu0 0
    %280 = vmatprep.subr.bf16.mxu0 0
    %281 = vmatpush1.bf16.msra.mxu0 0
    %282 = vmatprep.subr.bf16.mxu0 0
    %283 = vmatpush1.bf16.msra.mxu0 0
    %284 = vmatprep.subr.bf16.mxu0 0
    %285 = vmatpush1.bf16.msra.mxu0 0
    %286 = vmatprep.mubr.bf16.mxu0 0
    %287 = vmatmul.mubr.bf16.gmra.mrb[0].mxu0 %v198
    %v288 = vpop.f32.mrb[0].mxu0
    %v289 = vadd.f32 %v180, %v288
    %v290 = vpop.f32.mrb[0].mxu0
    %v291 = vadd.f32 %v182, %v290
    %v292 = vpop.f32.mrb[0].mxu0
    %v293 = vpop.f32.mrb[0].mxu0
    %294 = vdwg.mxu0
    %v295 = vld [vmem:[%s4] sm:$0xf]
    %v297 = vlaneseq
    %v298 = vshrl.u32 %v297, 7
    %v299 = vsub.s32 0, %v298
    %v300 = vrot.slane %v295, %v299
    %v301 = vlaneseq
    %v302 = vshrl.u32 %v301, 7
    %v303 = vsub.s32 1, %v302
    %v304 = vrot.slane %v295, %v303
    %v305 = vlaneseq
    %v306 = vshrl.u32 %v305, 7
    %v307 = vsub.s32 2, %v306
    %v308 = vrot.slane %v295, %v307
    %v309 = vlaneseq
    %v310 = vshrl.u32 %v309, 7
    %v311 = vsub.s32 3, %v310
    %v312 = vrot.slane %v295, %v311
    %v317 = vadd.f32 %v248, %v300
    %v318 = vadd.f32 %v250, %v304
    %v319 = vadd.f32 %v289, %v308
    %v320 = vadd.f32 %v291, %v312
    %v321 = vmax.f32 %v317, 0.0
    %v322 = vmax.f32 %v318, 0.0
    %v323 = vmax.f32 %v319, 0.0
    %v324 = vmax.f32 %v320, 0.0
    %v325 = vpack.c.bf16 %v321, %v321
    %v326 = vpack.c.bf16 %v322, %v322
    %v327 = vpack.c.bf16 %v323, %v323
    %v328 = vpack.c.bf16 %v324, %v324
    %v329 = vld [vmem:[#allocation6] sm:$0xff]
    %v330 = vld [vmem:[#allocation6 + $0x8] sm:$0xf]
    %v331 = vld [vmem:[#allocation6 + $0xc] sm:$0xff]
    %v332 = vld [vmem:[#allocation6 + $0x14] sm:$0xf]
    %v333 = vld [vmem:[#allocation6 + $0x18] sm:$0xff]
    %v334 = vld [vmem:[#allocation6 + $0x20] sm:$0xf]
    %v335 = vld [vmem:[#allocation6 + $0x24] sm:$0xff]
    %v336 = vld [vmem:[#allocation6 + $0x2c] sm:$0xf]
    %v337 = vld [vmem:[#allocation6 + $0x30] sm:$0xff]
    %v338 = vld [vmem:[#allocation6 + $0x38] sm:$0xf]
    %v339 = vld [vmem:[#allocation6 + $0x3c] sm:$0xff]
    %v340 = vld [vmem:[#allocation6 + $0x44] sm:$0xf]
    %v341 = vld [vmem:[#allocation6 + $0x48] sm:$0xff]
    %v342 = vld [vmem:[#allocation6 + $0x50] sm:$0xf]
    %v343 = vld [vmem:[#allocation6 + $0x54] sm:$0xff]
    %v344 = vld [vmem:[#allocation6 + $0x5c] sm:$0xf]
    %v345 = vld [vmem:[#allocation6 + $0x60] sm:$0xff]
    %v346 = vld [vmem:[#allocation6 + $0x68] sm:$0xf]
    %v347 = vld [vmem:[#allocation6 + $0x6c] sm:$0xff]
    %v348 = vld [vmem:[#allocation6 + $0x74] sm:$0xf]
    %v349 = vld [vmem:[#allocation6 + $0x78] sm:$0xff]
    %v350 = vld [vmem:[#allocation6 + $0x80] sm:$0xf]
    %v351 = vld [vmem:[#allocation6 + $0x84] sm:$0xff]
    %v352 = vld [vmem:[#allocation6 + $0x8c] sm:$0xf]
    %v353 = vld [vmem:[#allocation6 + $0x90] sm:$0xff]
    %v354 = vld [vmem:[#allocation6 + $0x98] sm:$0xf]
    %v355 = vld [vmem:[#allocation6 + $0x9c] sm:$0xff]
    %v356 = vld [vmem:[#allocation6 + $0xa4] sm:$0xf]
    %v357 = vld [vmem:[#allocation6 + $0xa8] sm:$0xff]
    %v358 = vld [vmem:[#allocation6 + $0xb0] sm:$0xf]
    %v359 = vld [vmem:[#allocation6 + $0xb4] sm:$0xff]
    %v360 = vld [vmem:[#allocation6 + $0xbc] sm:$0xf]
    %v361 = vld [vmem:[#allocation6 + $0xc0] sm:$0xff]
    %v362 = vld [vmem:[#allocation6 + $0xc8] sm:$0xf]
    %v363 = vld [vmem:[#allocation6 + $0xcc] sm:$0xff]
    %v364 = vld [vmem:[#allocation6 + $0xd4] sm:$0xf]
    %v365 = vld [vmem:[#allocation6 + $0xd8] sm:$0xff]
    %v366 = vld [vmem:[#allocation6 + $0xe0] sm:$0xf]
    %v367 = vld [vmem:[#allocation6 + $0xe4] sm:$0xff]
    %v368 = vld [vmem:[#allocation6 + $0xec] sm:$0xf]
    %v369 = vld [vmem:[#allocation6 + $0xf0] sm:$0xff]
    %v370 = vld [vmem:[#allocation6 + $0xf8] sm:$0xf]
    %v371 = vld [vmem:[#allocation6 + $0xfc] sm:$0xff]
    %v372 = vld [vmem:[#allocation6 + $0x104] sm:$0xf]
    %v373 = vld [vmem:[#allocation6 + $0x108] sm:$0xff]
    %v374 = vld [vmem:[#allocation6 + $0x110] sm:$0xf]
    %v375 = vld [vmem:[#allocation6 + $0x114] sm:$0xff]
    %v376 = vld [vmem:[#allocation6 + $0x11c] sm:$0xf]
    %v377 = vld [vmem:[#allocation6 + $0x120] sm:$0xff]
    %v378 = vld [vmem:[#allocation6 + $0x128] sm:$0xf]
    %v379 = vld [vmem:[#allocation6 + $0x12c] sm:$0xff]
    %v380 = vld [vmem:[#allocation6 + $0x134] sm:$0xf]
    %v381 = vld [vmem:[#allocation6 + $0x138] sm:$0xff]
    %v382 = vld [vmem:[#allocation6 + $0x140] sm:$0xf]
    %v383 = vld [vmem:[#allocation6 + $0x144] sm:$0xff]
    %v384 = vld [vmem:[#allocation6 + $0x14c] sm:$0xf]
    %v385 = vld [vmem:[#allocation6 + $0x150] sm:$0xff]
    %v386 = vld [vmem:[#allocation6 + $0x158] sm:$0xf]
    %v387 = vld [vmem:[#allocation6 + $0x15c] sm:$0xff]
    %v388 = vld [vmem:[#allocation6 + $0x164] sm:$0xf]
    %v389 = vld [vmem:[#allocation6 + $0x168] sm:$0xff]
    %v390 = vld [vmem:[#allocation6 + $0x170] sm:$0xf]
    %v391 = vld [vmem:[#allocation6 + $0x174] sm:$0xff]
    %v392 = vld [vmem:[#allocation6 + $0x17c] sm:$0xf]
    %v393 = vld [vmem:[#allocation6 + $0x180] sm:$0xff]
    %v394 = vld [vmem:[#allocation6 + $0x188] sm:$0xf]
    %v395 = vld [vmem:[#allocation6 + $0x18c] sm:$0xff]
    %v396 = vld [vmem:[#allocation6 + $0x194] sm:$0xf]
    %v397 = vld [vmem:[#allocation6 + $0x198] sm:$0xff]
    %v398 = vld [vmem:[#allocation6 + $0x1a0] sm:$0xf]
    %v399 = vld [vmem:[#allocation6 + $0x1a4] sm:$0xff]
    %v400 = vld [vmem:[#allocation6 + $0x1ac] sm:$0xf]
    %v401 = vld [vmem:[#allocation6 + $0x1b0] sm:$0xff]
    %v402 = vld [vmem:[#allocation6 + $0x1b8] sm:$0xf]
    %v403 = vld [vmem:[#allocation6 + $0x1bc] sm:$0xff]
    %v404 = vld [vmem:[#allocation6 + $0x1c4] sm:$0xf]
    %v405 = vld [vmem:[#allocation6 + $0x1c8] sm:$0xff]
    %v406 = vld [vmem:[#allocation6 + $0x1d0] sm:$0xf]
    %v407 = vld [vmem:[#allocation6 + $0x1d4] sm:$0xff]
    %v408 = vld [vmem:[#allocation6 + $0x1dc] sm:$0xf]
    %v409 = vld [vmem:[#allocation6 + $0x1e0] sm:$0xff]
    %v410 = vld [vmem:[#allocation6 + $0x1e8] sm:$0xf]
    %v411 = vld [vmem:[#allocation6 + $0x1ec] sm:$0xff]
    %v412 = vld [vmem:[#allocation6 + $0x1f4] sm:$0xf]
    %v413 = vld [vmem:[#allocation6 + $0x1f8] sm:$0xff]
    %v414 = vld [vmem:[#allocation6 + $0x200] sm:$0xf]
    %v415 = vld [vmem:[#allocation6 + $0x204] sm:$0xff]
    %v416 = vld [vmem:[#allocation6 + $0x20c] sm:$0xf]
    %v417 = vld [vmem:[#allocation6 + $0x210] sm:$0xff]
    %v418 = vld [vmem:[#allocation6 + $0x218] sm:$0xf]
    %v419 = vld [vmem:[#allocation6 + $0x21c] sm:$0xff]
    %v420 = vld [vmem:[#allocation6 + $0x224] sm:$0xf]
    %v421 = vld [vmem:[#allocation6 + $0x228] sm:$0xff]
    %v422 = vld [vmem:[#allocation6 + $0x230] sm:$0xf]
    %v423 = vld [vmem:[#allocation6 + $0x234] sm:$0xff]
    %v424 = vld [vmem:[#allocation6 + $0x23c] sm:$0xf]
    %v425 = vld [vmem:[#allocation6 + $0x240] sm:$0xff]
    %v426 = vld [vmem:[#allocation6 + $0x248] sm:$0xf]
    %v427 = vld [vmem:[#allocation6 + $0x24c] sm:$0xff]
    %v428 = vld [vmem:[#allocation6 + $0x254] sm:$0xf]
    %v429 = vld [vmem:[#allocation6 + $0x258] sm:$0xff]
    %v430 = vld [vmem:[#allocation6 + $0x260] sm:$0xf]
    %v431 = vld [vmem:[#allocation6 + $0x264] sm:$0xff]
    %v432 = vld [vmem:[#allocation6 + $0x26c] sm:$0xf]
    %v433 = vld [vmem:[#allocation6 + $0x270] sm:$0xff]
    %v434 = vld [vmem:[#allocation6 + $0x278] sm:$0xf]
    %v435 = vld [vmem:[#allocation6 + $0x27c] sm:$0xff]
    %v436 = vld [vmem:[#allocation6 + $0x284] sm:$0xf]
    %v437 = vld [vmem:[#allocation6 + $0x288] sm:$0xff]
    %v438 = vld [vmem:[#allocation6 + $0x290] sm:$0xf]
    %v439 = vld [vmem:[#allocation6 + $0x294] sm:$0xff]
    %v440 = vld [vmem:[#allocation6 + $0x29c] sm:$0xf]
    %v441 = vld [vmem:[#allocation6 + $0x2a0] sm:$0xff]
    %v442 = vld [vmem:[#allocation6 + $0x2a8] sm:$0xf]
    %v443 = vld [vmem:[#allocation6 + $0x2ac] sm:$0xff]
    %v444 = vld [vmem:[#allocation6 + $0x2b4] sm:$0xf]
    %v445 = vld [vmem:[#allocation6 + $0x2b8] sm:$0xff]
    %v446 = vld [vmem:[#allocation6 + $0x2c0] sm:$0xf]
    %v447 = vld [vmem:[#allocation6 + $0x2c4] sm:$0xff]
    %v448 = vld [vmem:[#allocation6 + $0x2cc] sm:$0xf]
    %v449 = vld [vmem:[#allocation6 + $0x2d0] sm:$0xff]
    %v450 = vld [vmem:[#allocation6 + $0x2d8] sm:$0xf]
    %v451 = vld [vmem:[#allocation6 + $0x2dc] sm:$0xff]
    %v452 = vld [vmem:[#allocation6 + $0x2e4] sm:$0xf]
    %v453 = vld [vmem:[#allocation6 + $0x2e8] sm:$0xff]
    %v454 = vld [vmem:[#allocation6 + $0x2f0] sm:$0xf]
    %v455 = vld [vmem:[#allocation6 + $0x2f4] sm:$0xff]
    %v456 = vld [vmem:[#allocation6 + $0x2fc] sm:$0xf]
    %v457 = vld [vmem:[%s6] sm:$0x7]
    %v459 = vlaneseq
    %v460 = vshrl.u32 %v459, 7
    %v461 = vsub.s32 0, %v460
    %v462 = vrot.slane %v457, %v461
    %v463 = vlaneseq
    %v464 = vshrl.u32 %v463, 7
    %v465 = vsub.s32 1, %v464
    %v466 = vrot.slane %v457, %v465
    %v467 = vlaneseq
    %v468 = vshrl.u32 %v467, 7
    %v469 = vsub.s32 2, %v468
    %v470 = vrot.slane %v457, %v469
    %v602 = vunpack.c.l.b16 %v329
    %v603 = vunpack.c.h.b16 %v329
    %v604 = vunpack.c.l.b16 %v330
    %v605 = vunpack.c.l.b16 %v331
    %v606 = vunpack.c.h.b16 %v331
    %v607 = vunpack.c.l.b16 %v332
    %v608 = vunpack.c.l.b16 %v333
    %v609 = vunpack.c.h.b16 %v333
    %v610 = vunpack.c.l.b16 %v334
    %v611 = vunpack.c.l.b16 %v335
    %v612 = vunpack.c.h.b16 %v335
    %v613 = vunpack.c.l.b16 %v336
    %v614 = vunpack.c.l.b16 %v337
    %v615 = vunpack.c.h.b16 %v337
    %v616 = vunpack.c.l.b16 %v338
    %v617 = vunpack.c.l.b16 %v339
    %v618 = vunpack.c.h.b16 %v339
    %v619 = vunpack.c.l.b16 %v340
    %v620 = vunpack.c.l.b16 %v341
    %v621 = vunpack.c.h.b16 %v341
    %v622 = vunpack.c.l.b16 %v342
    %v623 = vunpack.c.l.b16 %v343
    %v624 = vunpack.c.h.b16 %v343
    %v625 = vunpack.c.l.b16 %v344
    %v626 = vunpack.c.l.b16 %v345
    %v627 = vunpack.c.h.b16 %v345
    %v628 = vunpack.c.l.b16 %v346
    %v629 = vunpack.c.l.b16 %v347
    %v630 = vunpack.c.h.b16 %v347
    %v631 = vunpack.c.l.b16 %v348
    %v632 = vunpack.c.l.b16 %v349
    %v633 = vunpack.c.h.b16 %v349
    %v634 = vunpack.c.l.b16 %v350
    %v635 = vunpack.c.l.b16 %v351
    %v636 = vunpack.c.h.b16 %v351
    %v637 = vunpack.c.l.b16 %v352
    %v638 = vunpack.c.l.b16 %v353
    %v639 = vunpack.c.h.b16 %v353
    %v640 = vunpack.c.l.b16 %v354
    %v641 = vunpack.c.l.b16 %v355
    %v642 = vunpack.c.h.b16 %v355
    %v643 = vunpack.c.l.b16 %v356
    %v644 = vunpack.c.l.b16 %v357
    %v645 = vunpack.c.h.b16 %v357
    %v646 = vunpack.c.l.b16 %v358
    %v647 = vunpack.c.l.b16 %v359
    %v648 = vunpack.c.h.b16 %v359
    %v649 = vunpack.c.l.b16 %v360
    %v650 = vunpack.c.l.b16 %v361
    %v651 = vunpack.c.h.b16 %v361
    %v652 = vunpack.c.l.b16 %v362
    %v653 = vunpack.c.l.b16 %v363
    %v654 = vunpack.c.h.b16 %v363
    %v655 = vunpack.c.l.b16 %v364
    %v656 = vunpack.c.l.b16 %v365
    %v657 = vunpack.c.h.b16 %v365
    %v658 = vunpack.c.l.b16 %v366
    %v659 = vunpack.c.l.b16 %v367
    %v660 = vunpack.c.h.b16 %v367
    %v661 = vunpack.c.l.b16 %v368
    %v662 = vunpack.c.l.b16 %v369
    %v663 = vunpack.c.h.b16 %v369
    %v664 = vunpack.c.l.b16 %v370
    %v665 = vunpack.c.l.b16 %v371
    %v666 = vunpack.c.h.b16 %v371
    %v667 = vunpack.c.l.b16 %v372
    %v668 = vunpack.c.l.b16 %v373
    %v669 = vunpack.c.h.b16 %v373
    %v670 = vunpack.c.l.b16 %v374
    %v671 = vunpack.c.l.b16 %v375
    %v672 = vunpack.c.h.b16 %v375
    %v673 = vunpack.c.l.b16 %v376
    %v674 = vunpack.c.l.b16 %v377
    %v675 = vunpack.c.h.b16 %v377
    %v676 = vunpack.c.l.b16 %v378
    %v677 = vunpack.c.l.b16 %v379
    %v678 = vunpack.c.h.b16 %v379
    %v679 = vunpack.c.l.b16 %v380
    %v680 = vunpack.c.l.b16 %v381
    %v681 = vunpack.c.h.b16 %v381
    %v682 = vunpack.c.l.b16 %v382
    %v683 = vunpack.c.l.b16 %v383
    %v684 = vunpack.c.h.b16 %v383
    %v685 = vunpack.c.l.b16 %v384
    %v686 = vunpack.c.l.b16 %v385
    %v687 = vunpack.c.h.b16 %v385
    %v688 = vunpack.c.l.b16 %v386
    %v689 = vunpack.c.l.b16 %v387
    %v690 = vunpack.c.h.b16 %v387
    %v691 = vunpack.c.l.b16 %v388
    %v692 = vunpack.c.l.b16 %v389
    %v693 = vunpack.c.h.b16 %v389
    %v694 = vunpack.c.l.b16 %v390
    %v695 = vunpack.c.l.b16 %v391
    %v696 = vunpack.c.h.b16 %v391
    %v697 = vunpack.c.l.b16 %v392
    %v698 = vunpack.c.l.b16 %v393
    %v699 = vunpack.c.h.b16 %v393
    %v700 = vunpack.c.l.b16 %v394
    %v701 = vunpack.c.l.b16 %v395
    %v702 = vunpack.c.h.b16 %v395
    %v703 = vunpack.c.l.b16 %v396
    %v704 = vunpack.c.l.b16 %v397
    %v705 = vunpack.c.h.b16 %v397
    %v706 = vunpack.c.l.b16 %v398
    %v707 = vunpack.c.l.b16 %v399
    %v708 = vunpack.c.h.b16 %v399
    %v709 = vunpack.c.l.b16 %v400
    %v710 = vunpack.c.l.b16 %v401
    %v711 = vunpack.c.h.b16 %v401
    %v712 = vunpack.c.l.b16 %v402
    %v713 = vunpack.c.l.b16 %v403
    %v714 = vunpack.c.h.b16 %v403
    %v715 = vunpack.c.l.b16 %v404
    %v716 = vunpack.c.l.b16 %v405
    %v717 = vunpack.c.h.b16 %v405
    %v718 = vunpack.c.l.b16 %v406
    %v719 = vunpack.c.l.b16 %v407
    %v720 = vunpack.c.h.b16 %v407
    %v721 = vunpack.c.l.b16 %v408
    %v722 = vunpack.c.l.b16 %v409
    %v723 = vunpack.c.h.b16 %v409
    %v724 = vunpack.c.l.b16 %v410
    %v725 = vunpack.c.l.b16 %v411
    %v726 = vunpack.c.h.b16 %v411
    %v727 = vunpack.c.l.b16 %v412
    %v728 = vunpack.c.l.b16 %v413
    %v729 = vunpack.c.h.b16 %v413
    %v730 = vunpack.c.l.b16 %v414
    %v731 = vunpack.c.l.b16 %v415
    %v732 = vunpack.c.h.b16 %v415
    %v733 = vunpack.c.l.b16 %v416
    %v734 = vunpack.c.l.b16 %v417
    %v735 = vunpack.c.h.b16 %v417
    %v736 = vunpack.c.l.b16 %v418
    %v737 = vunpack.c.l.b16 %v419
    %v738 = vunpack.c.h.b16 %v419
    %v739 = vunpack.c.l.b16 %v420
    %v740 = vunpack.c.l.b16 %v421
    %v741 = vunpack.c.h.b16 %v421
    %v742 = vunpack.c.l.b16 %v422
    %v743 = vunpack.c.l.b16 %v423
    %v744 = vunpack.c.h.b16 %v423
    %v745 = vunpack.c.l.b16 %v424
    %v746 = vunpack.c.l.b16 %v425
    %v747 = vunpack.c.h.b16 %v425
    %v748 = vunpack.c.l.b16 %v426
    %v749 = vunpack.c.l.b16 %v427
    %v750 = vunpack.c.h.b16 %v427
    %v751 = vunpack.c.l.b16 %v428
    %v752 = vunpack.c.l.b16 %v429
    %v753 = vunpack.c.h.b16 %v429
    %v754 = vunpack.c.l.b16 %v430
    %v755 = vunpack.c.l.b16 %v431
    %v756 = vunpack.c.h.b16 %v431
    %v757 = vunpack.c.l.b16 %v432
    %v758 = vunpack.c.l.b16 %v433
    %v759 = vunpack.c.h.b16 %v433
    %v760 = vunpack.c.l.b16 %v434
    %v761 = vunpack.c.l.b16 %v435
    %v762 = vunpack.c.h.b16 %v435
    %v763 = vunpack.c.l.b16 %v436
    %v764 = vunpack.c.l.b16 %v437
    %v765 = vunpack.c.h.b16 %v437
    %v766 = vunpack.c.l.b16 %v438
    %v767 = vunpack.c.l.b16 %v439
    %v768 = vunpack.c.h.b16 %v439
    %v769 = vunpack.c.l.b16 %v440
    %v770 = vunpack.c.l.b16 %v441
    %v771 = vunpack.c.h.b16 %v441
    %v772 = vunpack.c.l.b16 %v442
    %v773 = vunpack.c.l.b16 %v443
    %v774 = vunpack.c.h.b16 %v443
    %v775 = vunpack.c.l.b16 %v444
    %v776 = vunpack.c.l.b16 %v445
    %v777 = vunpack.c.h.b16 %v445
    %v778 = vunpack.c.l.b16 %v446
    %v779 = vunpack.c.l.b16 %v447
    %v780 = vunpack.c.h.b16 %v447
    %v781 = vunpack.c.l.b16 %v448
    %v782 = vunpack.c.l.b16 %v449
    %v783 = vunpack.c.h.b16 %v449
    %v784 = vunpack.c.l.b16 %v450
    %v785 = vunpack.c.l.b16 %v451
    %v786 = vunpack.c.h.b16 %v451
    %v787 = vunpack.c.l.b16 %v452
    %v788 = vunpack.c.l.b16 %v453
    %v789 = vunpack.c.h.b16 %v453
    %v790 = vunpack.c.l.b16 %v454
    %v791 = vunpack.c.l.b16 %v455
    %v792 = vunpack.c.h.b16 %v455
    %v793 = vunpack.c.l.b16 %v456
    %v794 = vpack.c.b16 %v605, %v602
    %v795 = vpack.c.b16 %v606, %v603
    %v796 = vpack.c.b16 %v607, %v604
    %v797 = vpack.c.b16 %v611, %v608
    %v798 = vpack.c.b16 %v612, %v609
    %v799 = vpack.c.b16 %v613, %v610
    %v800 = vpack.c.b16 %v617, %v614
    %v801 = vpack.c.b16 %v618, %v615
    %v802 = vpack.c.b16 %v619, %v616
    %v803 = vpack.c.b16 %v623, %v620
    %v804 = vpack.c.b16 %v624, %v621
    %v805 = vpack.c.b16 %v625, %v622
    %v806 = vpack.c.b16 %v629, %v626
    %v807 = vpack.c.b16 %v630, %v627
    %v808 = vpack.c.b16 %v631, %v628
    %v809 = vpack.c.b16 %v635, %v632
    %v810 = vpack.c.b16 %v636, %v633
    %v811 = vpack.c.b16 %v637, %v634
    %v812 = vpack.c.b16 %v641, %v638
    %v813 = vpack.c.b16 %v642, %v639
    %v814 = vpack.c.b16 %v643, %v640
    %v815 = vpack.c.b16 %v647, %v644
    %v816 = vpack.c.b16 %v648, %v645
    %v817 = vpack.c.b16 %v649, %v646
    %v818 = vpack.c.b16 %v653, %v650
    %v819 = vpack.c.b16 %v654, %v651
    %v820 = vpack.c.b16 %v655, %v652
    %v821 = vpack.c.b16 %v659, %v656
    %v822 = vpack.c.b16 %v660, %v657
    %v823 = vpack.c.b16 %v661, %v658
    %v824 = vpack.c.b16 %v665, %v662
    %v825 = vpack.c.b16 %v666, %v663
    %v826 = vpack.c.b16 %v667, %v664
    %v827 = vpack.c.b16 %v671, %v668
    %v828 = vpack.c.b16 %v672, %v669
    %v829 = vpack.c.b16 %v673, %v670
    %v830 = vpack.c.b16 %v677, %v674
    %v831 = vpack.c.b16 %v678, %v675
    %v832 = vpack.c.b16 %v679, %v676
    %v833 = vpack.c.b16 %v683, %v680
    %v834 = vpack.c.b16 %v684, %v681
    %v835 = vpack.c.b16 %v685, %v682
    %v836 = vpack.c.b16 %v689, %v686
    %v837 = vpack.c.b16 %v690, %v687
    %v838 = vpack.c.b16 %v691, %v688
    %v839 = vpack.c.b16 %v695, %v692
    %v840 = vpack.c.b16 %v696, %v693
    %v841 = vpack.c.b16 %v697, %v694
    %v842 = vpack.c.b16 %v701, %v698
    %v843 = vpack.c.b16 %v702, %v699
    %v844 = vpack.c.b16 %v703, %v700
    %v845 = vpack.c.b16 %v707, %v704
    %v846 = vpack.c.b16 %v708, %v705
    %v847 = vpack.c.b16 %v709, %v706
    %v848 = vpack.c.b16 %v713, %v710
    %v849 = vpack.c.b16 %v714, %v711
    %v850 = vpack.c.b16 %v715, %v712
    %v851 = vpack.c.b16 %v719, %v716
    %v852 = vpack.c.b16 %v720, %v717
    %v853 = vpack.c.b16 %v721, %v718
    %v854 = vpack.c.b16 %v725, %v722
    %v855 = vpack.c.b16 %v726, %v723
    %v856 = vpack.c.b16 %v727, %v724
    %v857 = vpack.c.b16 %v731, %v728
    %v858 = vpack.c.b16 %v732, %v729
    %v859 = vpack.c.b16 %v733, %v730
    %v860 = vpack.c.b16 %v737, %v734
    %v861 = vpack.c.b16 %v738, %v735
    %v862 = vpack.c.b16 %v739, %v736
    %v863 = vpack.c.b16 %v743, %v740
    %v864 = vpack.c.b16 %v744, %v741
    %v865 = vpack.c.b16 %v745, %v742
    %v866 = vpack.c.b16 %v749, %v746
    %v867 = vpack.c.b16 %v750, %v747
    %v868 = vpack.c.b16 %v751, %v748
    %v869 = vpack.c.b16 %v755, %v752
    %v870 = vpack.c.b16 %v756, %v753
    %v871 = vpack.c.b16 %v757, %v754
    %v872 = vpack.c.b16 %v761, %v758
    %v873 = vpack.c.b16 %v762, %v759
    %v874 = vpack.c.b16 %v763, %v760
    %v875 = vpack.c.b16 %v767, %v764
    %v876 = vpack.c.b16 %v768, %v765
    %v877 = vpack.c.b16 %v769, %v766
    %v878 = vpack.c.b16 %v773, %v770
    %v879 = vpack.c.b16 %v774, %v771
    %v880 = vpack.c.b16 %v775, %v772
    %v881 = vpack.c.b16 %v779, %v776
    %v882 = vpack.c.b16 %v780, %v777
    %v883 = vpack.c.b16 %v781, %v778
    %v884 = vpack.c.b16 %v785, %v782
    %v885 = vpack.c.b16 %v786, %v783
    %v886 = vpack.c.b16 %v787, %v784
    %v887 = vpack.c.b16 %v791, %v788
    %v888 = vpack.c.b16 %v792, %v789
    %v889 = vpack.c.b16 %v793, %v790
    %986 = vmatprep.subr.bf16.mxu0 %v795
    %987 = vmatpush1.bf16.msra.mxu0 %v794
    %988 = vmatprep.subr.bf16.mxu0 %v798
    %989 = vmatpush1.bf16.msra.mxu0 %v797
    %990 = vmatprep.subr.bf16.mxu0 %v801
    %991 = vmatpush1.bf16.msra.mxu0 %v800
    %992 = vmatprep.subr.bf16.mxu0 %v804
    %993 = vmatpush1.bf16.msra.mxu0 %v803
    %994 = vmatprep.subr.bf16.mxu0 %v807
    %995 = vmatpush1.bf16.msra.mxu0 %v806
    %996 = vmatprep.subr.bf16.mxu0 %v810
    %997 = vmatpush1.bf16.msra.mxu0 %v809
    %998 = vmatprep.subr.bf16.mxu0 %v813
    %999 = vmatpush1.bf16.msra.mxu0 %v812
    %1000 = vmatprep.subr.bf16.mxu0 %v816
    %1001 = vmatpush1.bf16.msra.mxu0 %v815
    %1002 = vmatprep.subr.bf16.mxu0 %v819
    %1003 = vmatpush1.bf16.msra.mxu0 %v818
    %1004 = vmatprep.subr.bf16.mxu0 %v822
    %1005 = vmatpush1.bf16.msra.mxu0 %v821
    %1006 = vmatprep.subr.bf16.mxu0 %v825
    %1007 = vmatpush1.bf16.msra.mxu0 %v824
    %1008 = vmatprep.subr.bf16.mxu0 %v828
    %1009 = vmatpush1.bf16.msra.mxu0 %v827
    %1010 = vmatprep.subr.bf16.mxu0 %v831
    %1011 = vmatpush1.bf16.msra.mxu0 %v830
    %1012 = vmatprep.subr.bf16.mxu0 %v834
    %1013 = vmatpush1.bf16.msra.mxu0 %v833
    %1014 = vmatprep.subr.bf16.mxu0 %v837
    %1015 = vmatpush1.bf16.msra.mxu0 %v836
    %1016 = vmatprep.subr.bf16.mxu0 %v840
    %1017 = vmatpush1.bf16.msra.mxu0 %v839
    %1018 = vmatprep.mubr.bf16.mxu0 %v326
    %1019 = vmatmul.mubr.bf16.gmra.mrb[0].mxu0 %v325
    %v1020 = vpop.f32.mrb[0].mxu0
    %v1021 = vadd.f32 %v462, %v1020
    %v1022 = vpop.f32.mrb[0].mxu0
    %v1023 = vadd.f32 %v466, %v1022
    %v1024 = vpop.f32.mrb[0].mxu0
    %v1025 = vpop.f32.mrb[0].mxu0
    %1026 = vdwg.mxu0
    %1027 = vmatprep.subr.bf16.mxu0 %v843
    %1028 = vmatpush1.bf16.msra.mxu0 %v842
    %1029 = vmatprep.subr.bf16.mxu0 %v846
    %1030 = vmatpush1.bf16.msra.mxu0 %v845
    %1031 = vmatprep.subr.bf16.mxu0 %v849
    %1032 = vmatpush1.bf16.msra.mxu0 %v848
    %1033 = vmatprep.subr.bf16.mxu0 %v852
    %1034 = vmatpush1.bf16.msra.mxu0 %v851
    %1035 = vmatprep.subr.bf16.mxu0 %v855
    %1036 = vmatpush1.bf16.msra.mxu0 %v854
    %1037 = vmatprep.subr.bf16.mxu0 %v858
    %1038 = vmatpush1.bf16.msra.mxu0 %v857
    %1039 = vmatprep.subr.bf16.mxu0 %v861
    %1040 = vmatpush1.bf16.msra.mxu0 %v860
    %1041 = vmatprep.subr.bf16.mxu0 %v864
    %1042 = vmatpush1.bf16.msra.mxu0 %v863
    %1043 = vmatprep.subr.bf16.mxu0 %v867
    %1044 = vmatpush1.bf16.msra.mxu0 %v866
    %1045 = vmatprep.subr.bf16.mxu0 %v870
    %1046 = vmatpush1.bf16.msra.mxu0 %v869
    %1047 = vmatprep.subr.bf16.mxu0 %v873
    %1048 = vmatpush1.bf16.msra.mxu0 %v872
    %1049 = vmatprep.subr.bf16.mxu0 %v876
    %1050 = vmatpush1.bf16.msra.mxu0 %v875
    %1051 = vmatprep.subr.bf16.mxu0 %v879
    %1052 = vmatpush1.bf16.msra.mxu0 %v878
    %1053 = vmatprep.subr.bf16.mxu0 %v882
    %1054 = vmatpush1.bf16.msra.mxu0 %v881
    %1055 = vmatprep.subr.bf16.mxu0 %v885
    %1056 = vmatpush1.bf16.msra.mxu0 %v884
    %1057 = vmatprep.subr.bf16.mxu0 %v888
    %1058 = vmatpush1.bf16.msra.mxu0 %v887
    %1059 = vmatprep.mubr.bf16.mxu0 %v328
    %1060 = vmatmul.mubr.bf16.gmra.mrb[0].mxu0 %v327
    %v1061 = vpop.f32.mrb[0].mxu0
    %v1062 = vadd.f32 %v1021, %v1061
    %v1063 = vpop.f32.mrb[0].mxu0
    %v1064 = vadd.f32 %v1023, %v1063
    %v1065 = vpop.f32.mrb[0].mxu0
    %v1066 = vpop.f32.mrb[0].mxu0
    %1067 = vdwg.mxu0
    %1068 = vmatprep.subr.bf16.mxu0 0
    %1069 = vmatpush1.bf16.msra.mxu0 %v796
    %1070 = vmatprep.subr.bf16.mxu0 0
    %1071 = vmatpush1.bf16.msra.mxu0 %v799
    %1072 = vmatprep.subr.bf16.mxu0 0
    %1073 = vmatpush1.bf16.msra.mxu0 %v802
    %1074 = vmatprep.subr.bf16.mxu0 0
    %1075 = vmatpush1.bf16.msra.mxu0 %v805
    %1076 = vmatprep.subr.bf16.mxu0 0
    %1077 = vmatpush1.bf16.msra.mxu0 %v808
    %1078 = vmatprep.subr.bf16.mxu0 0
    %1079 = vmatpush1.bf16.msra.mxu0 %v811
    %1080 = vmatprep.subr.bf16.mxu0 0
    %1081 = vmatpush1.bf16.msra.mxu0 %v814
    %1082 = vmatprep.subr.bf16.mxu0 0
    %1083 = vmatpush1.bf16.msra.mxu0 %v817
    %1084 = vmatprep.subr.bf16.mxu0 0
    %1085 = vmatpush1.bf16.msra.mxu0 %v820
    %1086 = vmatprep.subr.bf16.mxu0 0
    %1087 = vmatpush1.bf16.msra.mxu0 %v823
    %1088 = vmatprep.subr.bf16.mxu0 0
    %1089 = vmatpush1.bf16.msra.mxu0 %v826
    %1090 = vmatprep.subr.bf16.mxu0 0
    %1091 = vmatpush1.bf16.msra.mxu0 %v829
    %1092 = vmatprep.subr.bf16.mxu0 0
    %1093 = vmatpush1.bf16.msra.mxu0 %v832
    %1094 = vmatprep.subr.bf16.mxu0 0
    %1095 = vmatpush1.bf16.msra.mxu0 %v835
    %1096 = vmatprep.subr.bf16.mxu0 0
    %1097 = vmatpush1.bf16.msra.mxu0 %v838
    %1098 = vmatprep.subr.bf16.mxu0 0
    %1099 = vmatpush1.bf16.msra.mxu0 %v841
    %1100 = vmatprep.mubr.bf16.mxu0 %v326
    %1101 = vmatmul.mubr.bf16.gmra.mrb[0].mxu0 %v325
    %v1102 = vpop.f32.mrb[0].mxu0
    %v1103 = vadd.f32 %v470, %v1102
    %v1104 = vpop.f32.mrb[0].mxu0
    %v1105 = vpop.f32.mrb[0].mxu0
    %v1106 = vpop.f32.mrb[0].mxu0
    %1107 = vdwg.mxu0
    %1108 = vmatprep.subr.bf16.mxu0 0
    %1109 = vmatpush1.bf16.msra.mxu0 %v844
    %1110 = vmatprep.subr.bf16.mxu0 0
    %1111 = vmatpush1.bf16.msra.mxu0 %v847
    %1112 = vmatprep.subr.bf16.mxu0 0
    %1113 = vmatpush1.bf16.msra.mxu0 %v850
    %1114 = vmatprep.subr.bf16.mxu0 0
    %1115 = vmatpush1.bf16.msra.mxu0 %v853
    %1116 = vmatprep.subr.bf16.mxu0 0
    %1117 = vmatpush1.bf16.msra.mxu0 %v856
    %1118 = vmatprep.subr.bf16.mxu0 0
    %1119 = vmatpush1.bf16.msra.mxu0 %v859
    %1120 = vmatprep.subr.bf16.mxu0 0
    %1121 = vmatpush1.bf16.msra.mxu0 %v862
    %1122 = vmatprep.subr.bf16.mxu0 0
    %1123 = vmatpush1.bf16.msra.mxu0 %v865
    %1124 = vmatprep.subr.bf16.mxu0 0
    %1125 = vmatpush1.bf16.msra.mxu0 %v868
    %1126 = vmatprep.subr.bf16.mxu0 0
    %1127 = vmatpush1.bf16.msra.mxu0 %v871
    %1128 = vmatprep.subr.bf16.mxu0 0
    %1129 = vmatpush1.bf16.msra.mxu0 %v874
    %1130 = vmatprep.subr.bf16.mxu0 0
    %1131 = vmatpush1.bf16.msra.mxu0 %v877
    %1132 = vmatprep.subr.bf16.mxu0 0
    %1133 = vmatpush1.bf16.msra.mxu0 %v880
    %1134 = vmatprep.subr.bf16.mxu0 0
    %1135 = vmatpush1.bf16.msra.mxu0 %v883
    %1136 = vmatprep.subr.bf16.mxu0 0
    %1137 = vmatpush1.bf16.msra.mxu0 %v886
    %1138 = vmatprep.subr.bf16.mxu0 0
    %1139 = vmatpush1.bf16.msra.mxu0 %v889
    %1140 = vmatprep.mubr.bf16.mxu0 %v328
    %1141 = vmatmul.mubr.bf16.gmra.mrb[0].mxu0 %v327
    %v1142 = vpop.f32.mrb[0].mxu0
    %v1143 = vadd.f32 %v1103, %v1142
    %v1144 = vpop.f32.mrb[0].mxu0
    %v1145 = vpop.f32.mrb[0].mxu0
    %v1146 = vpop.f32.mrb[0].mxu0
    %1147 = vdwg.mxu0
    %v1148 = vmax.f32 %v1062, 0.0
    %v1149 = vmax.f32 %v1064, 0.0
    %v1150 = vmax.f32 %v1143, 0.0
    %v1151 = vld [vmem:[%s7] sm:$0x7]
    %v1152 = vunpack.c.l.bf16 %v1151
    %v1154 = vlaneseq
    %v1155 = vshrl.u32 %v1154, 7
    %v1156 = vsub.s32 0, %v1155
    %v1157 = vrot.slane %v1152, %v1156
    %v1158 = vlaneseq
    %v1159 = vshrl.u32 %v1158, 7
    %v1160 = vsub.s32 2, %v1159
    %v1161 = vrot.slane %v1152, %v1160
    %v1162 = vlaneseq
    %v1163 = vshrl.u32 %v1162, 7
    %v1164 = vsub.s32 4, %v1163
    %v1165 = vrot.slane %v1152, %v1164
    %v1169 = vlaneseq
    %v1170 = vshrl.u32 %v1169, 7
    %v1171 = vsub.s32 0, %v1170
    %v1172 = vrot.slane %v1157, %v1171
    %v1173 = vlaneseq
    %v1174 = vshrl.u32 %v1173, 7
    %v1175 = vsub.s32 0, %v1174
    %v1176 = vrot.slane %v1161, %v1175
    %v1177 = vlaneseq
    %v1178 = vshrl.u32 %v1177, 7
    %v1179 = vsub.s32 0, %v1178
    %v1180 = vrot.slane %v1165, %v1179
    %v1181 = vmul.f32 %v1148, %v1172
    %v1182 = vmul.f32 %v1149, %v1176
    %v1183 = vmul.f32 %v1150, %v1180
    %v1184 = vadd.f32 %v1181, %v1182
    %v1185 = vadd.f32 %v1184, %v1183
    %1186 = vadd.xlane.f32.xlu0 %v1185
    %v1187 = vpop.xlane.xlu0 %1186
    %v1188 = vld [vmem:[#allocation2] sm:$0x1]
    %v1190 = vlaneseq
    %v1191 = vshrl.u32 %v1190, 7
    %v1192 = vsub.s32 0, %v1191
    %v1193 = vrot.slane %v1188, %v1192
    %v1195 = vadd.f32 %v1187, %v1193
    %1197 = vset.pattern.permute.xlu0 0
    %1198 = vperm.xlu0 %1197, %v1195
    %v1199 = vpop.permute.xlu0 %1198
    %1201 = vst [vmem:[#allocation8] sm:$0xff] %v1199
    // Predicated region
    $region46: #{tpu_custom_call.1} parent=1 // pred_check
      _
    $region47: #{tpu_custom_call.1} parent=1 // pred_check_branch
      %1203 = sbr.rel (0) target = $region49
    $region48: #{tpu_custom_call.1} parent=1 // pred_region
      %s1205 = ssub.s32 128, 128
      %1206 = vsyncadd [#allocation5], %s1205
      %s1208 = sshll.u32 [#allocation8], 4
      %s1209 = int_to_ptr.vmem [resolvable:$true] %s1208
      %1211 = dma.vmem_to_hbm [thread:$0]  %s1209, 128, %s9, [#allocation5]
    $region49: #{tpu_custom_call.1} parent=1 // pred_fallthru
      _
    // Predicated region
    $region50: #{tpu_custom_call.1} parent=1 // pred_check
      _
    $region51: #{tpu_custom_call.1} parent=1 // pred_check_branch
      %1213 = sbr.rel (0) target = $region53
    $region52: #{tpu_custom_call.1} parent=1 // pred_region
      %1214 = dma.done [#allocation5], 128
    $region53: #{tpu_custom_call.1} parent=1 // pred_fallthru
      _
    %1215 = vsyncpa [#allocation4], 1
    %1216 = vsyncpa [#allocation7], 1
    %1217 = vsyncpa [#allocation5], 1

</llo_original>
